<compile_context>
chip_gen: v6e
topology: v6e:2x2x1
jax: 0.10.0
libtpu: 0.0.40
codegen_flags: <defaults>
</compile_context>

<pallas_src>
import numpy as np
import jax
import jax.numpy as jnp
from jax import lax
from jax.experimental import pallas as pl
from jax.experimental.pallas import tpu as pltpu

NUM_CLASSES = 10
_LANES = 128

# ----------------------------------------------------------------------------
# Constant target_map table (row i corresponds to label i), built in-script.
# ----------------------------------------------------------------------------
_TARGET_MAP = np.asarray(
    [
        [0, 0.333, 0.333, 0.333, 0.333, 0.333, 0.333, 0.333, 0.333, 0.333],
        [1, 0.0, 0.0, 0.0, 0.0, 0.0, 0.0, 0.0, 0.0, 0.0],
        [0, -0.118, 0.943, -0.118, -0.118, -0.118, -0.118, -0.118, -0.118, -0.118],
        [0, -0.134, 1.78e-16, 0.935, -0.134, -0.134, -0.134, -0.134, -0.134, -0.134],
        [0, -0.154, 1.999e-16, 3.997e-16, 0.926, -0.154, -0.154, -0.154, -0.154, -0.154],
        [0, -0.183, 1.824e-16, 3.953e-16, 6.081e-17, 0.913, -0.183, -0.183, -0.183, -0.183],
        [0, -0.224, 1.738e-16, 4.469e-16, 7.448e-17, -9.93e-17, 0.894, -0.224, -0.224, -0.224],
        [0, -0.289, 2.134e-16, 4.914e-16, 6.41e-17, -1.282e-16, 1.282e-16, 0.866, -0.289, -0.289],
        [0, -0.408, 3.108e-16, 7.576e-16, 9.712e-17, -1.165e-16, 2.331e-16, -3.885e-17, 0.816, -0.408],
        [0, -0.707, 5.103e-16, 1.178e-15, 1.963e-16, -1.57e-16, 3.14e-16, -3.925e-17, -2.355e-16, 0.707],
    ],
    dtype=np.float64,
)

# Trace-time constant folding: unit-normalize each target row so the x2-norm
# is exactly 1 and never computed in-kernel.  Rows stay as rows: the kernel
# does proj = table_norm @ x1_t  ->  [NUM_CLASSES, bt].
_ROW_NORMS = np.sqrt((_TARGET_MAP * _TARGET_MAP).sum(axis=1, keepdims=True))
_TABLE_NORM = np.ascontiguousarray(_TARGET_MAP / _ROW_NORMS)  # [C, C], unit rows

_MAX_SINGLE_BLOCK_COLS = 65536   # grid-less path up to 64K batch cols (~6 MiB VMEM)
_DEFAULT_BLOCK_COLS = 32768      # tiled path: 32K lanes/tile (~6 MiB double-buffered)


# ----------------------------------------------------------------------------
# Shared per-column cosine math (transposed, lane-dense layout).
#   x1:     [C, bt] f32   (class axis on sublanes, batch on lanes)
#   labels: [1, bt] int32
#   table:  [C, C]  f32   (rows pre-normalized)
# Returns cos similarity per column, [1, bt].
# ----------------------------------------------------------------------------
def _cos_columns(x1, labels, table):
    proj = jnp.dot(table, x1, preferred_element_type=jnp.float32)        # [C, bt]
    onehot = (
        lax.broadcasted_iota(jnp.int32, proj.shape, 0) == labels
    ).astype(jnp.float32)                                                # [C, bt]
    num = jnp.sum(proj * onehot, axis=0, keepdims=True)                  # [1, bt]
    s1 = jnp.sum(x1 * x1, axis=0, keepdims=True)                         # [1, bt]
    # Target rows are pre-normalized -> denominator is just ||x1||.
    return num * lax.rsqrt(s1)                                           # [1, bt]


# ----------------------------------------------------------------------------
# Kernels.
# ----------------------------------------------------------------------------
def _make_single_block_kernel(batch):
    inv_b = 1.0 / batch

    def kernel(x1_ref, tgt_ref, table_ref, out_ref):
        x1 = x1_ref[...].astype(jnp.float32)
        cos = _cos_columns(x1, tgt_ref[...], table_ref[...])
        out_ref[0] = jnp.sum(1.0 - cos) * inv_b                          # SMEM scalar

    return kernel


def _make_tiled_kernel(batch, block_cols):
    def kernel(x1_ref, tgt_ref, table_ref, out_ref):
        i = pl.program_id(0)
        x1 = x1_ref[...].astype(jnp.float32)
        cos = _cos_columns(x1, tgt_ref[...], table_ref[...])
        # Mask out lanes that are past the end of the batch (ragged last tile).
        col = lax.broadcasted_iota(jnp.int32, cos.shape, 1) + i * block_cols
        contrib = jnp.where(col < batch, 1.0 - cos, 0.0)
        partial = jnp.sum(contrib)
        # Each grid step owns its own output block -> safe under "parallel"
        # (both v7x TensorCores can share the batch axis).
        out_ref[...] = jnp.full((1, 1, _LANES), partial, dtype=jnp.float32)

    return kernel


# ----------------------------------------------------------------------------
# Wrapper.
# ----------------------------------------------------------------------------
def cosine_similarity_loss(x1, target, *, block_cols=None):
    """x1: [B, 10] float array (model output), target: [B] int labels in [0, 9]."""
    batch, c = x1.shape
    assert c == NUM_CLASSES, "target_map defines 10-dimensional targets"
    if x1.dtype not in (jnp.float32, jnp.bfloat16):
        x1 = x1.astype(jnp.float32)
    # Lane-dense layout: class axis on sublanes, batch on the 128-lane axis.
    x1_t = x1.T                                                      # [C, B]
    tgt = target.astype(jnp.int32).reshape(1, batch)                 # [1, B]
    table = jnp.asarray(_TABLE_NORM, dtype=jnp.float32)              # [C, C]

    if block_cols is None and batch <= _MAX_SINGLE_BLOCK_COLS:
        # Whole problem fits in a few MiB of VMEM: no grid, no pipeline machinery.
        out = pl.pallas_call(
            _make_single_block_kernel(batch),
            out_shape=jax.ShapeDtypeStruct((1,), jnp.float32),
            in_specs=[
                pl.BlockSpec(memory_space=pltpu.MemorySpace.VMEM),
                pl.BlockSpec(memory_space=pltpu.MemorySpace.VMEM),
                pl.BlockSpec(memory_space=pltpu.MemorySpace.VMEM),
            ],
            out_specs=pl.BlockSpec(memory_space=pltpu.MemorySpace.SMEM),
        )(x1_t, tgt, table)
        return out[0]

    # Tiled batch (lane) axis for large B: per-tile partial sums, parallel grid.
    bt = _DEFAULT_BLOCK_COLS if block_cols is None else int(block_cols)
    bt = max(_LANES, (bt // _LANES) * _LANES)                        # 128-lane multiple
    num_tiles = pl.cdiv(batch, bt)

    # VMEM budget: x1 tile (<=16 sublanes after padding) + label tile (8 sublanes),
    # double-buffered; keep the scoped limit generous but below v7x physical 64 MiB.
    x1_bytes = 2 if x1_t.dtype == jnp.bfloat16 else 4
    est = 2 * (16 * bt * x1_bytes) + 2 * (8 * bt * 4) + (1 << 20)
    vmem_limit = int(min(60 * 2**20, max(32 * 2**20, 2 * est)))

    partials = pl.pallas_call(
        _make_tiled_kernel(batch, bt),
        out_shape=jax.ShapeDtypeStruct((num_tiles, 1, _LANES), jnp.float32),
        grid=(num_tiles,),
        in_specs=[
            pl.BlockSpec((NUM_CLASSES, bt), lambda i: (0, i)),
            pl.BlockSpec((1, bt), lambda i: (0, i)),
            pl.BlockSpec((NUM_CLASSES, NUM_CLASSES), lambda i: (0, 0)),
        ],
        out_specs=pl.BlockSpec((1, 1, _LANES), lambda i: (i, 0, 0)),
        compiler_params=pltpu.CompilerParams(
            dimension_semantics=("parallel",),
            vmem_limit_bytes=vmem_limit,
        ),
    )(x1_t, tgt, table)
    # Tiny final reduction over num_tiles partials outside the kernel.
    return jnp.sum(partials[:, 0, 0]) * (1.0 / batch)


# ----------------------------------------------------------------------------
# Pure-JAX reference mirroring the original PyTorch module (un-normalized table).
# ----------------------------------------------------------------------------
def _ref_loss(x1, target):
    table = jnp.asarray(_TARGET_MAP, dtype=jnp.float32)
    x2 = table[target]
    x1 = x1.astype(jnp.float32)
    n1 = jnp.sqrt(jnp.sum(x1 * x1, axis=1))
    n2 = jnp.sqrt(jnp.sum(x2 * x2, axis=1))
    cos = jnp.sum(x1 * x2, axis=1) / (n1 * n2)
    return jnp.mean(1.0 - cos)


if __name__ == "__main__":
    key = jax.random.PRNGKey(0)
    k1, k2, k3, k4 = jax.random.split(key, 4)

    # Small case: single-block (grid-less) path.
    B, C = 8, NUM_CLASSES
    x1 = jax.random.normal(k1, (B, C), dtype=jnp.float32)
    target = jax.random.randint(k2, (B,), 0, NUM_CLASSES, dtype=jnp.int32)
    loss = cosine_similarity_loss(x1, target)
    jax.block_until_ready(loss)
    ref = _ref_loss(x1, target)
    assert jnp.allclose(loss, ref, atol=1e-5, rtol=1e-5), (loss, ref)

    # Larger case: force the tiled path (3 tiles of 128 lanes, ragged tail masked,
    # per-tile partials, "parallel" batch axis).
    B2 = 300
    x1b = jax.random.normal(k3, (B2, C), dtype=jnp.float32)
    tgtb = jax.random.randint(k4, (B2,), 0, NUM_CLASSES, dtype=jnp.int32)
    loss2 = cosine_similarity_loss(x1b, tgtb, block_cols=128)
    jax.block_until_ready(loss2)
    ref2 = _ref_loss(x1b, tgtb)
    assert jnp.allclose(loss2, ref2, atol=1e-5, rtol=1e-5), (loss2, ref2)

    print("KERNEL_OK")
</pallas_src>

<mosaic_0001>
module attributes {stable_mosaic.version = 11 : i64} {
  func.func @kernel(%arg0: memref<10x8xf32, #tpu.memory_space<vmem>>, %arg1: memref<1x8xi32, #tpu.memory_space<vmem>>, %arg2: memref<10x10xf32, #tpu.memory_space<vmem>>, %arg3: memref<1xf32, #tpu.memory_space<smem>>) attributes {dimension_semantics = [], scalar_prefetch = 0 : i64, scratch_operands = 0 : i64, tpu.core_type = #tpu.core_type<tc>} {
    %c0 = arith.constant 0 : index
    %c0_0 = arith.constant 0 : index
    %0 = vector.load %arg0[%c0, %c0_0] : memref<10x8xf32, #tpu.memory_space<vmem>>, vector<10x8xf32>
    %c0_1 = arith.constant 0 : index
    %c0_2 = arith.constant 0 : index
    %1 = vector.load %arg1[%c0_1, %c0_2] : memref<1x8xi32, #tpu.memory_space<vmem>>, vector<1x8xi32>
    %c0_3 = arith.constant 0 : index
    %c0_4 = arith.constant 0 : index
    %2 = vector.load %arg2[%c0_3, %c0_4] : memref<10x10xf32, #tpu.memory_space<vmem>>, vector<10x10xf32>
    %cst = arith.constant dense<0.000000e+00> : vector<10x8xf32>
    %3 = tpu.matmul %2, %0, %cst {dimension_numbers = #tpu.dot_dimension_numbers<[1], [0], [0], [1], [0, 0, 1, 1], [], []>} : vector<10x10xf32>, vector<10x8xf32>, vector<10x8xf32> -> vector<10x8xf32>
    %4 = tpu.iota {dimensions = array<i32: 0>} : vector<10x8xi32>
    %5 = vector.broadcast %1 : vector<1x8xi32> to vector<10x8xi32>
    %6 = arith.cmpi eq, %4, %5 : vector<10x8xi32>
    %7 = arith.extui %6 : vector<10x8xi1> to vector<10x8xi32>
    %8 = arith.sitofp %7 : vector<10x8xi32> to vector<10x8xf32>
    %9 = arith.mulf %3, %8 : vector<10x8xf32>
    %cst_5 = arith.constant dense<0.000000e+00> : vector<8xf32>
    %10 = vector.multi_reduction <add>, %9, %cst_5 [0] : vector<10x8xf32> to vector<8xf32>
    %11 = vector.shape_cast %10 : vector<8xf32> to vector<1x8xf32>
    %12 = arith.mulf %0, %0 : vector<10x8xf32>
    %cst_6 = arith.constant dense<0.000000e+00> : vector<8xf32>
    %13 = vector.multi_reduction <add>, %12, %cst_6 [0] : vector<10x8xf32> to vector<8xf32>
    %14 = vector.shape_cast %13 : vector<8xf32> to vector<1x8xf32>
    %15 = math.rsqrt %14 : vector<1x8xf32>
    %16 = arith.mulf %11, %15 : vector<1x8xf32>
    %cst_7 = arith.constant 1.000000e+00 : f32
    %17 = vector.broadcast %cst_7 : f32 to vector<1x8xf32>
    %18 = arith.subf %17, %16 : vector<1x8xf32>
    %19 = vector.shape_cast %18 : vector<1x8xf32> to vector<1x1x8xf32>
    %cst_8 = arith.constant dense<0.000000e+00> : vector<1xf32>
    %20 = vector.multi_reduction <add>, %19, %cst_8 [1, 2] : vector<1x1x8xf32> to vector<1xf32>
    %21 = vector.shape_cast %20 : vector<1xf32> to vector<1x1x1xf32>
    %22 = vector.extract %21[0, 0, 0] : f32 from vector<1x1x1xf32>
    %cst_9 = arith.constant 1.250000e-01 : f32
    %23 = arith.mulf %22, %cst_9 : f32
    %c0_10 = arith.constant 0 : index
    %24 = memref.load %arg3[%c0_10] : memref<1xf32, #tpu.memory_space<smem>>
    memref.store %23, %arg3[%c0_10] : memref<1xf32, #tpu.memory_space<smem>>
    return
  }
}

</mosaic_0001>

<llo_original>
// kernel: tpu_custom_call.1
$region0: #{tpu_custom_call.1}
  #allocation0 [shape = 'u32[]', space=smem, size = 0x4, offset = 0x4, fixed_abs, tag = 'smem constant byte address 0x4 - core index']
  #allocation1 [shape = 'u32[144,128]{1,0:T(1,128)}', space=vmem, size = 0x12000, scoped, tag = 'internal scratch']
  %s0 = inlined_call_operand.vmem [shape: f32[10,8], index: 0, kind: input, shape index: {}]
  %s1 = inlined_call_operand.vmem [shape: s32[1,8], index: 1, kind: input, shape index: {}]
  %s2 = inlined_call_operand.vmem [shape: f32[10,10], index: 2, kind: input, shape index: {}]
  %s3 = inlined_call_operand.hbm [shape: f32[1], index: 3, kind: output, shape index: {}]
  %s4 = sld [smem:[#allocation0]]
  $region22: #{tpu_custom_call.1} parent=0
    _
  %s6 = ssub.s32 1, %s4
  %s7 = scalar_select 0, %s6, %s4
  $region1: #{tpu_custom_call.1} parent=0
    #allocation2 [shape = 'u8[512]{0}', space=smem, size = 0x200, scoped, tag = 'output window, operand 0, single buffered']
    #allocation3 [shape = 's32[1]{0}', space=sflag, size = 0x4, scoped, tag = 'scoped memory for tpu_custom_call.1']
    %8 = vsyncpa [#allocation3], 0
    // Predicated region
    $region2: #{tpu_custom_call.1} parent=1 // pred_check
      _
    $region3: #{tpu_custom_call.1} parent=1 // pred_check_branch
      %10 = sbr.rel (0) target = $region5
    $region4: #{tpu_custom_call.1} parent=1 // pred_region
      _
    $region5: #{tpu_custom_call.1} parent=1 // pred_fallthru
      _
    // Predicated region
    $region6: #{tpu_custom_call.1} parent=1 // pred_check
      _
    $region7: #{tpu_custom_call.1} parent=1 // pred_check_branch
      %12 = sbr.rel (0) target = $region9
    $region8: #{tpu_custom_call.1} parent=1 // pred_region
      _
    $region9: #{tpu_custom_call.1} parent=1 // pred_fallthru
      _
    // Predicated region
    $region10: #{tpu_custom_call.1} parent=1 // pred_check
      _
    $region11: #{tpu_custom_call.1} parent=1 // pred_check_branch
      %14 = sbr.rel (0) target = $region13
    $region12: #{tpu_custom_call.1} parent=1 // pred_region
      _
    $region13: #{tpu_custom_call.1} parent=1 // pred_fallthru
      _
    %v15 = vld [vmem:[%s0] sm:$0xff]
    %v16 = vld [vmem:[%s0 + $0x8] sm:$0x3]
    %v17 = vld [vmem:[%s1] sm:$0x1]
    %v18 = vld [vmem:[%s2] sm:$0xff]
    %v19 = vld [vmem:[%s2 + $0x8] sm:$0x3]
    %vm20 = vcmask 80896
    %v22 = vsel %vm20, %v18, 0
    %v25 = vsel %vm20, %v19, 0
    %vm27 = vcmask 1041408
    %v29 = vsel %vm27, %v16, 0
    %31 = vmatprep.subr.mxu0 0.0
    %32 = vmatpush1.msra.mxu0 0.0
    %33 = vmatprep.subr.mxu0 0.0
    %34 = vmatpush1.msra.mxu0 0.0
    %35 = vmatprep.subr.mxu0 0.0
    %36 = vmatpush1.msra.mxu0 0.0
    %37 = vmatprep.subr.mxu0 0.0
    %38 = vmatpush1.msra.mxu0 0.0
    %39 = vmatprep.subr.mxu0 0.0
    %40 = vmatpush1.msra.mxu0 0.0
    %41 = vmatprep.subr.mxu0 0.0
    %42 = vmatpush1.msra.mxu0 0.0
    %43 = vmatprep.subr.mxu0 0.0
    %44 = vmatpush1.msra.mxu0 0.0
    %45 = vmatprep.subr.mxu0 0.0
    %46 = vmatpush1.msra.mxu0 0.0
    %47 = vmatprep.subr.mxu0 0.0
    %48 = vmatpush1.msra.mxu0 0.0
    %49 = vmatprep.subr.mxu0 0.0
    %50 = vmatpush1.msra.mxu0 0.0
    %51 = vmatprep.subr.mxu0 0.0
    %52 = vmatpush1.msra.mxu0 0.0
    %53 = vmatprep.subr.mxu0 0.0
    %54 = vmatpush1.msra.mxu0 0.0
    %55 = vmatprep.subr.mxu0 0.0
    %56 = vmatpush1.msra.mxu0 0.0
    %57 = vmatprep.subr.mxu0 0.0
    %58 = vmatpush1.msra.mxu0 0.0
    %59 = vmatprep.subr.mxu0 0.0
    %60 = vmatpush1.msra.mxu0 %v29
    %61 = vmatprep.subr.mxu0 0.0
    %62 = vmatpush1.msra.mxu0 %v15
    %63 = vmatprep.subr.mxu0 0.0
    %64 = vmatpush2.msra.mxu0 0.0
    %65 = vmatprep.subr.mxu0 0.0
    %66 = vmatpush2.msra.mxu0 0.0
    %67 = vmatprep.subr.mxu0 0.0
    %68 = vmatpush2.msra.mxu0 0.0
    %69 = vmatprep.subr.mxu0 0.0
    %70 = vmatpush2.msra.mxu0 0.0
    %71 = vmatprep.subr.mxu0 0.0
    %72 = vmatpush2.msra.mxu0 0.0
    %73 = vmatprep.subr.mxu0 0.0
    %74 = vmatpush2.msra.mxu0 0.0
    %75 = vmatprep.subr.mxu0 0.0
    %76 = vmatpush2.msra.mxu0 0.0
    %77 = vmatprep.subr.mxu0 0.0
    %78 = vmatpush2.msra.mxu0 0.0
    %79 = vmatprep.subr.mxu0 0.0
    %80 = vmatpush2.msra.mxu0 0.0
    %81 = vmatprep.subr.mxu0 0.0
    %82 = vmatpush2.msra.mxu0 0.0
    %83 = vmatprep.subr.mxu0 0.0
    %84 = vmatpush2.msra.mxu0 0.0
    %85 = vmatprep.subr.mxu0 0.0
    %86 = vmatpush2.msra.mxu0 0.0
    %87 = vmatprep.subr.mxu0 0.0
    %88 = vmatpush2.msra.mxu0 0.0
    %89 = vmatprep.subr.mxu0 0.0
    %90 = vmatpush2.msra.mxu0 0.0
    %91 = vmatprep.subr.mxu0 0.0
    %92 = vmatpush2.msra.mxu0 0.0
    %93 = vmatprep.subr.mxu0 0.0
    %94 = vmatpush2.msra.mxu0 0.0
    %95 = vmatprep.mubr.f32.mxu0 0.0
    %96 = vmatmul.mubr.f32.gmra.mxu0 %v22
    %v97 = vpop.f32.mrf.mxu0
    %v98 = vadd.f32 0.0, %v97
    %v99 = vpop.f32.mrf.mxu0
    %100 = vmatprep.mubr.f32.mxu0 0.0
    %101 = vmatmul.mubr.f32.gmra.mxu0 %v25
    %v102 = vpop.f32.mrf.mxu0
    %v103 = vadd.f32 0.0, %v102
    %v104 = vpop.f32.mrf.mxu0
    %105 = vdwg.mxu0
    %v106 = vlaneseq
    %v107 = vshrl.u32 %v106, 7
    %v108 = vadd.s32 %v107, 8
    %v109 = vlaneseq
    %v110 = vshrl.u32 %v109, 7
    %v111 = vsub.s32 0, %v110
    %v112 = vrot.slane %v17, %v111
    %vm113 = vcmp.eq.s32.totalorder %v107, %v112
    %vm114 = vcmp.eq.s32.totalorder %v108, %v112
    %v115 = vsel %vm113, 1, 0
    %v116 = vsel %vm114, 1, 0
    %v117 = vcvt.s32.f32 %v115
    %v118 = vcvt.s32.f32 %v116
    %v119 = vmul.f32 %v98, %v117
    %v120 = vmul.f32 %v103, %v118
    %vm121 = vcmask 64512
    %v122 = vsel %vm121, %v119, 0.0
    %vm123 = vcmask 58368
    %v124 = vsel %vm123, %v120, 0.0
    %v125 = vadd.f32 %v122, %v124
    %v126 = vrot.slane %v125, 4
    %v127 = vadd.f32 %v125, %v126
    %v128 = vrot.slane %v127, 2
    %v129 = vadd.f32 %v127, %v128
    %v130 = vrot.slane %v129, 1
    %v131 = vadd.f32 %v129, %v130
    %v132 = vmul.f32 %v15, %v15
    %v133 = vmul.f32 %v16, %v16
    %v134 = vsel %vm121, %v132, 0.0
    %v135 = vsel %vm123, %v133, 0.0
    %v136 = vadd.f32 %v134, %v135
    %v137 = vrot.slane %v136, 4
    %v138 = vadd.f32 %v136, %v137
    %v139 = vrot.slane %v138, 2
    %v140 = vadd.f32 %v138, %v139
    %v141 = vrot.slane %v140, 1
    %v142 = vadd.f32 %v140, %v141
    %v143 = vrsqrt.pop %v142
    %v144 = vmul.f32 %v131, %v143
    %v145 = vsub.f32 1.0, %v144
    %vm146 = vcmask 57344
    %v147 = vsel %vm146, %v145, 0.0
    %148 = vadd.xlane.f32.xlu0 %v147
    %v149 = vpop.xlane.xlu0 %148
    %v150 = vrot.slane %v149, 4
    %v151 = vadd.f32 %v149, %v150
    %v152 = vrot.slane %v151, 2
    %v153 = vadd.f32 %v151, %v152
    %v154 = vrot.slane %v153, 1
    %v155 = vadd.f32 %v153, %v154
    %s156 = vtos %v155
    %s157 = smul.f32 %s156, 0.125
    %s158 = scalar_lea.smem [#allocation2], 0
    %159 = sst [smem:[%s158]] %s157
    // Predicated region
    $region14: #{tpu_custom_call.1} parent=1 // pred_check
      _
    $region15: #{tpu_custom_call.1} parent=1 // pred_check_branch
      %161 = sbr.rel (0) target = $region17
    $region16: #{tpu_custom_call.1} parent=1 // pred_region
      %s163 = ssub.s32 16, 16
      %164 = vsyncadd [#allocation3], %s163
      %167 = dma.smem_to_hbm [#allocation2], 16, %s3, [#allocation3]
    $region17: #{tpu_custom_call.1} parent=1 // pred_fallthru
      _
    // Predicated region
    $region18: #{tpu_custom_call.1} parent=1 // pred_check
      _
    $region19: #{tpu_custom_call.1} parent=1 // pred_check_branch
      %169 = sbr.rel (0) target = $region21
    $region20: #{tpu_custom_call.1} parent=1 // pred_region
      %170 = dma.done [#allocation3], 16
    $region21: #{tpu_custom_call.1} parent=1 // pred_fallthru
      _
    %171 = sfence
    %172 = vsyncpa [#allocation3], 1

</llo_original>
